<compile_context>
chip_gen: v7x
topology: tpu7x:2x2x1
jax: 0.10.0
libtpu: 0.0.40
codegen_flags: <defaults>
</compile_context>

<pallas_src>
import jax
import jax.numpy as jnp
from jax.experimental import pallas as pl
from jax.experimental.pallas import tpu as pltpu


def transition_fwd_kernel(p_ref, la_ref, out_ref):
    # p_ref:  (N, N) resident probability matrix, P[i, k] = softmax(matrix, axis=0)[i, k]
    # la_ref: (N, bt) tile of log_alpha.T (states on sublanes, batch on the 128-lane axis)
    p = p_ref[...].astype(jnp.float32)                     # (N, N)
    la = la_ref[...].astype(jnp.float32)                   # (N, bt)
    n = p.shape[0]

    m = jnp.max(la, axis=0, keepdims=True)                 # (1, bt): cheap cross-sublane max
    # Guard all(-inf) columns: exp(la - 0) = 0 -> acc = 0 -> log = -inf -> m + (-inf) = -inf,
    # matching torch.logsumexp, with no NaN from (-inf) - (-inf).
    m_safe = jnp.where(jnp.isfinite(m), m, jnp.zeros_like(m))
    w = jnp.exp(la - m_safe)                               # (N, bt), entries in [0, 1]

    # out_T[i, b] = m[b] + log( sum_k P[i, k] * w[k, b] )
    # N rank-1 updates on the VPU: lane-broadcast a P column x sublane-broadcast a w row.
    acc = p[:, 0:1] * w[0:1, :]
    for k in range(1, n):                                  # N = 4-8: fully unrolled at trace time
        acc = acc + p[:, k:k + 1] * w[k:k + 1, :]

    out_ref[...] = (m + jnp.log(acc)).astype(out_ref.dtype)


def transition_matrix_forward_t(matrix, log_alpha_t, *, batch_tile=32768):
    """Lane-dense core.  matrix: (N, N) raw parameter.  log_alpha_t: (N, B) = log_alpha.T.
    Returns out.T of shape (N, B)."""
    N, B = log_alpha_t.shape
    assert matrix.shape == (N, N)
    # Hoist the tiny N x N column-softmax out of the kernel (one cheap XLA op per call).
    p = jax.nn.softmax(matrix.astype(jnp.float32), axis=0)

    if B <= batch_tile:
        bt = B                                             # single grid step: full-extent block
    else:
        bt = batch_tile
        assert bt % 128 == 0, "batch_tile must be a multiple of 128 when tiling the lane axis"
    grid = (pl.cdiv(B, bt),)

    return pl.pallas_call(
        transition_fwd_kernel,
        out_shape=jax.ShapeDtypeStruct((N, B), log_alpha_t.dtype),
        grid=grid,
        in_specs=[
            # Probability matrix: same block every step -> stays resident in VMEM.
            pl.BlockSpec((N, N), lambda b: (0, 0)),
            # log_alpha.T: lane-dense batch tiles, auto double-buffered by the Pallas pipeline.
            pl.BlockSpec((N, bt), lambda b: (0, b)),
        ],
        out_specs=pl.BlockSpec((N, bt), lambda b: (0, b)),
        compiler_params=pltpu.CompilerParams(
            dimension_semantics=("parallel",),             # independent batch tiles (v7x megacore)
        ),
    )(p, log_alpha_t)


def transition_matrix_forward(matrix, log_alpha, *, batch_tile=32768):
    """Module-compatible wrapper.  matrix: (N, N) raw parameter (pre-log_softmax).
    log_alpha: (B, N).  Returns (B, N)."""
    out_t = transition_matrix_forward_t(matrix, log_alpha.T, batch_tile=batch_tile)
    return out_t.T


def reference_forward(matrix, log_alpha):
    """Pure-JAX reference mirroring the PyTorch module."""
    log_t = jax.nn.log_softmax(matrix, axis=0)
    s = log_t[None, :, :] + log_alpha[:, None, :]
    return jax.scipy.special.logsumexp(s, axis=-1)


if __name__ == "__main__":
    key = jax.random.PRNGKey(0)
    k1, k2, k3, k4 = jax.random.split(key, 4)

    # --- Case 1: module-scale shapes (N = 4 HMM states, batch = 8), single grid step ---
    N, B = 4, 8
    transitions = jax.random.normal(k1, (N, N), dtype=jnp.float32)
    log_alpha = jax.nn.log_softmax(
        jax.random.normal(k2, (B, N), dtype=jnp.float32), axis=-1)

    out = transition_matrix_forward(transitions, log_alpha)
    jax.block_until_ready(out)
    ref = reference_forward(transitions, log_alpha)
    assert out.shape == (B, N)
    assert jnp.allclose(out, ref, atol=1e-5, rtol=1e-5), (out, ref)

    # --- Case 2: larger batch exercising the batch grid (4 tiles) and the -inf guard ---
    N2, B2 = 8, 1024
    transitions2 = jax.random.normal(k3, (N2, N2), dtype=jnp.float32)
    log_alpha2 = jax.nn.log_softmax(
        jax.random.normal(k4, (B2, N2), dtype=jnp.float32), axis=-1)
    log_alpha2 = log_alpha2.at[0].set(-jnp.inf)            # structurally-zero alpha row

    out2 = transition_matrix_forward(transitions2, log_alpha2, batch_tile=256)
    jax.block_until_ready(out2)
    ref2 = reference_forward(transitions2, log_alpha2)
    assert out2.shape == (B2, N2)
    assert bool(jnp.all(jnp.isneginf(out2[0])))            # matches torch.logsumexp(-inf row)
    assert jnp.allclose(out2[1:], ref2[1:], atol=1e-5, rtol=1e-5)

    print("KERNEL_OK")
</pallas_src>

<mosaic_0001>
module attributes {stable_mosaic.version = 11 : i64} {
  func.func @transition_fwd_kernel(%arg0: i32, %arg1: memref<4x4xf32, #tpu.memory_space<vmem>>, %arg2: memref<4x8xf32, #tpu.memory_space<vmem>>, %arg3: memref<4x8xf32, #tpu.memory_space<vmem>>) attributes {dimension_semantics = [#tpu.dimension_semantics<parallel>], iteration_bounds = array<i64: 1>, scalar_prefetch = 0 : i64, scratch_operands = 0 : i64, tpu.core_type = #tpu.core_type<tc>, window_params = [{pipeline_mode = #tpu.pipeline_mode<synchronous>, transform_indices = @transform_0, window_bounds = array<i64: 4, 4>}, {transform_indices = @transform_1, window_bounds = array<i64: 4, 8>}, {transform_indices = @transform_2, window_bounds = array<i64: 4, 8>}]} {
    %c0 = arith.constant 0 : index
    %c0_0 = arith.constant 0 : index
    %0 = vector.load %arg1[%c0, %c0_0] : memref<4x4xf32, #tpu.memory_space<vmem>>, vector<4x4xf32>
    %c0_1 = arith.constant 0 : index
    %c0_2 = arith.constant 0 : index
    %1 = vector.load %arg2[%c0_1, %c0_2] : memref<4x8xf32, #tpu.memory_space<vmem>>, vector<4x8xf32>
    %cst = arith.constant dense<0xFF800000> : vector<8xf32>
    %2 = vector.multi_reduction <maximumf>, %1, %cst [0] : vector<4x8xf32> to vector<8xf32>
    %3 = vector.shape_cast %2 : vector<8xf32> to vector<1x8xf32>
    %4 = tpu.weird %3 : vector<1x8xf32> -> vector<1x8xi1>
    %cst_3 = arith.constant dense<true> : vector<1x8xi1>
    %5 = arith.xori %4, %cst_3 : vector<1x8xi1>
    %cst_4 = arith.constant 0.000000e+00 : f32
    %6 = vector.broadcast %cst_4 : f32 to vector<1x8xf32>
    %7 = arith.select %5, %3, %6 : vector<1x8xi1>, vector<1x8xf32>
    %8 = vector.broadcast %7 : vector<1x8xf32> to vector<4x8xf32>
    %9 = arith.subf %1, %8 : vector<4x8xf32>
    %10 = math.exp %9 : vector<4x8xf32>
    %11 = vector.extract_strided_slice %0 {offsets = [0, 0], sizes = [4, 1], strides = [1, 1]} : vector<4x4xf32> to vector<4x1xf32>
    %12 = vector.extract_strided_slice %10 {offsets = [0, 0], sizes = [1, 8], strides = [1, 1]} : vector<4x8xf32> to vector<1x8xf32>
    %13 = vector.broadcast %11 : vector<4x1xf32> to vector<4x8xf32>
    %14 = vector.broadcast %12 : vector<1x8xf32> to vector<4x8xf32>
    %15 = arith.mulf %13, %14 : vector<4x8xf32>
    %16 = vector.extract_strided_slice %0 {offsets = [0, 1], sizes = [4, 1], strides = [1, 1]} : vector<4x4xf32> to vector<4x1xf32>
    %17 = vector.extract_strided_slice %10 {offsets = [1, 0], sizes = [1, 8], strides = [1, 1]} : vector<4x8xf32> to vector<1x8xf32>
    %18 = vector.broadcast %16 : vector<4x1xf32> to vector<4x8xf32>
    %19 = vector.broadcast %17 : vector<1x8xf32> to vector<4x8xf32>
    %20 = arith.mulf %18, %19 : vector<4x8xf32>
    %21 = arith.addf %15, %20 : vector<4x8xf32>
    %22 = vector.extract_strided_slice %0 {offsets = [0, 2], sizes = [4, 1], strides = [1, 1]} : vector<4x4xf32> to vector<4x1xf32>
    %23 = vector.extract_strided_slice %10 {offsets = [2, 0], sizes = [1, 8], strides = [1, 1]} : vector<4x8xf32> to vector<1x8xf32>
    %24 = vector.broadcast %22 : vector<4x1xf32> to vector<4x8xf32>
    %25 = vector.broadcast %23 : vector<1x8xf32> to vector<4x8xf32>
    %26 = arith.mulf %24, %25 : vector<4x8xf32>
    %27 = arith.addf %21, %26 : vector<4x8xf32>
    %28 = vector.extract_strided_slice %0 {offsets = [0, 3], sizes = [4, 1], strides = [1, 1]} : vector<4x4xf32> to vector<4x1xf32>
    %29 = vector.extract_strided_slice %10 {offsets = [3, 0], sizes = [1, 8], strides = [1, 1]} : vector<4x8xf32> to vector<1x8xf32>
    %30 = vector.broadcast %28 : vector<4x1xf32> to vector<4x8xf32>
    %31 = vector.broadcast %29 : vector<1x8xf32> to vector<4x8xf32>
    %32 = arith.mulf %30, %31 : vector<4x8xf32>
    %33 = arith.addf %27, %32 : vector<4x8xf32>
    %34 = math.log %33 : vector<4x8xf32>
    %35 = vector.broadcast %3 : vector<1x8xf32> to vector<4x8xf32>
    %36 = arith.addf %35, %34 : vector<4x8xf32>
    %c0_5 = arith.constant 0 : index
    %c0_6 = arith.constant 0 : index
    %37 = vector.load %arg3[%c0_5, %c0_6] : memref<4x8xf32, #tpu.memory_space<vmem>>, vector<4x8xf32>
    tpu.vector_store %arg3[%c0_5, %c0_6], %36 {strides = array<i32>} : memref<4x8xf32, #tpu.memory_space<vmem>>, vector<4x8xf32>,
    return
  }
  func.func @transform_0(%arg0: i32) -> (i32, i32) {
    %c0_i32 = arith.constant 0 : i32
    %c0_i32_0 = arith.constant 0 : i32
    %c0_i32_1 = arith.constant 0 : i32
    return %c0_i32, %c0_i32_0 : i32, i32
  }
  func.func @transform_1(%arg0: i32) -> (i32, i32) {
    %c0_i32 = arith.constant 0 : i32
    %c0_i32_0 = arith.constant 0 : i32
    return %c0_i32, %arg0 : i32, i32
  }
  func.func @transform_2(%arg0: i32) -> (i32, i32) {
    %c0_i32 = arith.constant 0 : i32
    %c0_i32_0 = arith.constant 0 : i32
    return %c0_i32, %arg0 : i32, i32
  }
}

</mosaic_0001>

<llo_original>
// kernel: tpu_custom_call.1
$region0: #{tpu_custom_call.1}
  #allocation0 [shape = 'u32[]', space=smem, size = 0x4, offset = 0x4, fixed_abs, tag = 'smem constant byte address 0x4 - core index']
  #allocation1 [shape = 'u32[144,128]{1,0:T(1,128)}', space=vmem, size = 0x12000, scoped, tag = 'internal scratch']
  %s0 = inlined_call_operand.hbm [shape: f32[4,4], index: 0, kind: input, shape index: {}]
  %s1 = inlined_call_operand.hbm [shape: f32[4,8], index: 1, kind: input, shape index: {}]
  %s2 = inlined_call_operand.hbm [shape: f32[4,8], index: 2, kind: output, shape index: {}]
  %s3 = sld [smem:[#allocation0]]
  $region26: #{tpu_custom_call.1} parent=0
    _
  %s5 = ssub.s32 1, %s3
  %s6 = scalar_select 0, %s5, %s3
  $region1: #{tpu_custom_call.1} parent=0
    #allocation2 [shape = 'u8[2048]{0}', space=vmem, size = 0x800, scoped, tag = 'input window, operand 0, single buffered']
    #allocation3 [shape = 's32[1]{0}', space=sflag, size = 0x4, scoped, tag = 'scoped memory for tpu_custom_call.1']
    #allocation4 [shape = 's32[1]{0}', space=sflag, size = 0x4, scoped, tag = 'scoped memory for tpu_custom_call.1']
    #allocation5 [shape = 'u8[2048]{0}', space=vmem, size = 0x800, scoped, tag = 'input window, operand 1, single buffered']
    #allocation6 [shape = 's32[1]{0}', space=sflag, size = 0x4, scoped, tag = 'scoped memory for tpu_custom_call.1']
    #allocation7 [shape = 'u8[2048]{0}', space=vmem, size = 0x800, scoped, tag = 'output window, operand 0, single buffered']
    %7 = vsyncpa [#allocation3], 0
    %8 = vsyncpa [#allocation6], 0
    %9 = vsyncpa [#allocation4], 0
    // Predicated region
    $region2: #{tpu_custom_call.1} parent=1 // pred_check
      _
    $region3: #{tpu_custom_call.1} parent=1 // pred_check_branch
      %11 = sbr.rel (0) target = $region5
    $region4: #{tpu_custom_call.1} parent=1 // pred_region
      %s13 = ssub.s32 64, 64
      %14 = vsyncadd [#allocation3], %s13
      %s16 = sshll.u32 [#allocation2], 4
      %s17 = int_to_ptr.vmem [resolvable:$true] %s16
      %19 = dma.hbm_to_vmem [thread:$0]  %s0, 64, %s17, [#allocation3]
    $region5: #{tpu_custom_call.1} parent=1 // pred_fallthru
      _
    // Predicated region
    $region6: #{tpu_custom_call.1} parent=1 // pred_check
      _
    $region7: #{tpu_custom_call.1} parent=1 // pred_check_branch
      %21 = sbr.rel (0) target = $region9
    $region8: #{tpu_custom_call.1} parent=1 // pred_region
      %s23 = ssub.s32 64, 64
      %24 = vsyncadd [#allocation6], %s23
      %s26 = sshll.u32 [#allocation5], 4
      %s27 = int_to_ptr.vmem [resolvable:$true] %s26
      %29 = dma.hbm_to_vmem [thread:$0]  %s1, 64, %s27, [#allocation6]
    $region9: #{tpu_custom_call.1} parent=1 // pred_fallthru
      _
    // Predicated region
    $region10: #{tpu_custom_call.1} parent=1 // pred_check
      _
    $region11: #{tpu_custom_call.1} parent=1 // pred_check_branch
      %31 = sbr.rel (0) target = $region13
    $region12: #{tpu_custom_call.1} parent=1 // pred_region
      %32 = dma.done [#allocation3], 64
    $region13: #{tpu_custom_call.1} parent=1 // pred_fallthru
      _
    // Predicated region
    $region14: #{tpu_custom_call.1} parent=1 // pred_check
      _
    $region15: #{tpu_custom_call.1} parent=1 // pred_check_branch
      %34 = sbr.rel (0) target = $region17
    $region16: #{tpu_custom_call.1} parent=1 // pred_region
      %35 = dma.done [#allocation6], 64
    $region17: #{tpu_custom_call.1} parent=1 // pred_fallthru
      _
    %v36 = vld [vmem:[#allocation2] sm:$0xf]
    %v37 = vld [vmem:[#allocation5] sm:$0xf]
    %vm38 = vcmask 60416
    %v39 = vsel %vm38, %v37, -inf
    %v40 = vrot.slane %v39, 4
    %v41 = vmax.f32 %v39, %v40
    %v42 = vrot.slane %v41, 2
    %v43 = vmax.f32 %v41, %v42
    %v44 = vrot.slane %v43, 1
    %v45 = vmax.f32 %v43, %v44
    %vm46 = vweird.f32 %v45
    %vm47 = vmxor %vm46, 1
    %v48 = vsel %vm47, %v45, 0.0
    %v49 = vsub.f32 %v37, %v48
    %v50 = vmul.f32 %v49, 1.442695
    %v51 = vpow.pop %v50
    %53 = vset.pattern.permute.xlu0 0
    %54 = vperm.xlu0 %53, %v36
    %v55 = vpop.permute.xlu0 %54
    %v57 = vlaneseq
    %v58 = vshrl.u32 %v57, 7
    %v59 = vsub.s32 0, %v58
    %v60 = vrot.slane %v51, %v59
    %v61 = vmul.f32 %v55, %v60
    %62 = vset.pattern.permute.xlu0 1
    %63 = vperm.xlu0 %62, %v36
    %v64 = vpop.permute.xlu0 %63
    %v66 = vlaneseq
    %v67 = vshrl.u32 %v66, 7
    %v68 = vsub.s32 1, %v67
    %v69 = vrot.slane %v51, %v68
    %v70 = vmul.f32 %v64, %v69
    %v71 = vadd.f32 %v61, %v70
    %72 = vset.pattern.permute.xlu0 2
    %73 = vperm.xlu0 %72, %v36
    %v74 = vpop.permute.xlu0 %73
    %v76 = vlaneseq
    %v77 = vshrl.u32 %v76, 7
    %v78 = vsub.s32 2, %v77
    %v79 = vrot.slane %v51, %v78
    %v80 = vmul.f32 %v74, %v79
    %v81 = vadd.f32 %v71, %v80
    %82 = vset.pattern.permute.xlu0 3
    %83 = vperm.xlu0 %82, %v36
    %v84 = vpop.permute.xlu0 %83
    %v86 = vlaneseq
    %v87 = vshrl.u32 %v86, 7
    %v88 = vsub.s32 3, %v87
    %v89 = vrot.slane %v51, %v88
    %v90 = vmul.f32 %v84, %v89
    %v91 = vadd.f32 %v81, %v90
    %v92 = vlog2.pop %v91
    %v93 = vmul.f32 %v92, 0.6931472
    %v94 = vadd.f32 %v45, %v93
    %95 = vst.msk [vmem:[#allocation7] sm:$0xf] %vm38, %v94
    // Predicated region
    $region18: #{tpu_custom_call.1} parent=1 // pred_check
      _
    $region19: #{tpu_custom_call.1} parent=1 // pred_check_branch
      %97 = sbr.rel (0) target = $region21
    $region20: #{tpu_custom_call.1} parent=1 // pred_region
      %s99 = ssub.s32 64, 64
      %100 = vsyncadd [#allocation4], %s99
      %s102 = sshll.u32 [#allocation7], 4
      %s103 = int_to_ptr.vmem [resolvable:$true] %s102
      %105 = dma.vmem_to_hbm [thread:$0]  %s103, 64, %s2, [#allocation4]
    $region21: #{tpu_custom_call.1} parent=1 // pred_fallthru
      _
    // Predicated region
    $region22: #{tpu_custom_call.1} parent=1 // pred_check
      _
    $region23: #{tpu_custom_call.1} parent=1 // pred_check_branch
      %107 = sbr.rel (0) target = $region25
    $region24: #{tpu_custom_call.1} parent=1 // pred_region
      %108 = dma.done [#allocation4], 64
    $region25: #{tpu_custom_call.1} parent=1 // pred_fallthru
      _
    %109 = vsyncpa [#allocation3], 1
    %110 = vsyncpa [#allocation6], 1
    %111 = vsyncpa [#allocation4], 1

</llo_original>
